<compile_context>
chip_gen: v6e
topology: v6e:2x2x1
jax: 0.10.0
libtpu: 0.0.40
codegen_flags: <defaults>
</compile_context>

<pallas_src>
import functools

import jax
import jax.numpy as jnp
from jax import lax
from jax.experimental import pallas as pl
from jax.experimental.pallas import tpu as pltpu


_TV_MAX = 8192  # max vocab lanes per chunk (multiple of 128)


def _lm_criterion_kernel(inp_ref, tgt_ref, msk_ref, out_ref, *,
                         n_rows, vocab, tile_rows, tile_vocab):
    """Grid: (row tiles ["parallel"], vocab tiles ["arbitrary"]).

    inp_ref: (TM, TV)  float   log-prob tile (input dtype, never padded wrapper-side)
    tgt_ref: (TM, 1)   int32   target ids (resident across the vocab axis)
    msk_ref: (TM, 1)   float   mask (input dtype)
    out_ref: (8, 128)  float32 per-row-tile partials: [0,0]=num, [0,1]=den
    """
    i = pl.program_id(0)
    kv = pl.program_id(1)

    @pl.when(kv == 0)
    def _():
        out_ref[...] = jnp.zeros_like(out_ref)

    inp = inp_ref[...]                        # (TM, TV)
    tgt = tgt_ref[...]                        # (TM, 1) int32
    msk = msk_ref[...].astype(jnp.float32)    # (TM, 1) f32
    tm, tv = inp.shape

    # Ragged row tail: rows >= n_rows hold garbage (possibly NaN); kill them
    # inside the one-hot and the mask so nothing can propagate.
    row_idx = i * tile_rows + lax.broadcasted_iota(jnp.int32, (tm, 1), 0)
    valid = row_idx < n_rows                                   # (TM, 1) bool

    # Gather inp[n, tgt[n]] restricted to this vocab chunk. Exactly one chunk
    # matches per row, so summing chunk partials reconstructs the full gather.
    # The reduction stays in the input dtype (single nonzero per row -> exact).
    tgt_local = tgt - kv * tile_vocab                          # (TM, 1) int32
    lane_idx = lax.broadcasted_iota(jnp.int32, (tm, tv), 1)    # (TM, TV)
    onehot = (lane_idx == tgt_local) & valid
    if vocab % tile_vocab != 0:
        # Ragged vocab tail: garbage lanes past V must never be selected.
        onehot = onehot & (kv * tile_vocab + lane_idx < vocab)
    # TODO(synk): if a v7x bundle dump shows VALU saturation for packed dtypes,
    # decompose into tgt_hi/tgt_lo vs a reused (TM,128) lane iota per 128-lane block.

    zero = jnp.zeros((), dtype=inp.dtype)
    gathered = jnp.sum(jnp.where(onehot, inp, zero), axis=1, keepdims=True)  # (TM,1)

    msk_v = jnp.where(valid, msk, 0.0)                         # (TM, 1) f32
    num = jnp.sum(-gathered.astype(jnp.float32) * msk_v)       # f32 scalar
    den = jnp.where(kv == 0, jnp.sum(msk_v), 0.0)              # count mask once

    sub = lax.broadcasted_iota(jnp.int32, (8, 128), 0)
    lane = lax.broadcasted_iota(jnp.int32, (8, 128), 1)
    out_ref[...] += jnp.where((sub == 0) & (lane == 0), num,
                              jnp.where((sub == 0) & (lane == 1), den, 0.0))


def _vmem_capacity_bytes():
    try:
        return int(pltpu.get_tpu_info().vmem_capacity_bytes)
    except Exception:
        return 64 * 1024 * 1024   # conservative fallback (v7x per-TC VMEM)


def _pick_tiles(n_rows, vocab, itemsize, vmem_capacity):
    """Generation-aware row/vocab tile sizes.

    Input tile targets ~capacity/8 of streamed DMA per grid step (v7x ~8 MiB,
    v6e/v5e ~16 MiB); a per-row VMEM model (double-buffered input block,
    lane-padded (TM,1) sidecars, int32 iota / select / bool intermediates)
    keeps total usage comfortably under the raised vmem_limit_bytes.
    """
    tv = vocab if vocab <= _TV_MAX else _TV_MAX
    align = 8 if itemsize >= 4 else (16 if itemsize == 2 else 32)

    target_block_bytes = max(vmem_capacity // 8, 2 * 1024 * 1024)
    per_row_bytes = (2 * tv * itemsize            # input block, double-buffered
                     + tv * (4 + itemsize + 1)    # iota + select + bool temps
                     + 2 * 128 * 4                # (TM,1) int32 target, lane-padded, dbuf
                     + 2 * 128 * itemsize)        # (TM,1) mask, lane-padded, dbuf
    vmem_budget = (vmem_capacity * 3) // 5        # headroom under vmem_limit_bytes

    tm = max(target_block_bytes // (tv * itemsize), align)
    tm = min(tm, max(vmem_budget // per_row_bytes, align))
    if tm >= n_rows:
        tm = n_rows                               # full row extent is always legal
    else:
        tm = max((tm // align) * align, align)
    return int(tm), int(tv)


@functools.partial(jax.jit, static_argnames=("tile_rows", "tile_vocab"))
def language_model_criterion(inp, target, mask, tile_rows=None, tile_vocab=None):
    """inp: (B, T, V) float log-probs; target: (B, T) int; mask: (B, T) float.

    Returns scalar: sum(-inp.gather(2, target) * mask) / sum(mask)
    (den == 0, i.e. an all-zero mask, yields NaN/Inf exactly like PyTorch.)
    """
    if target.ndim == 3:
        target = target.reshape(-1, target.shape[2])
        mask = mask.reshape(-1, mask.shape[2])

    B, T, V = inp.shape
    target = target[:, :T]
    mask = mask[:, :T].astype(inp.dtype)          # match PyTorch mask.to(input)

    N = B * T
    inp_f = inp.reshape(N, V)
    tgt_f = target.reshape(N, 1).astype(jnp.int32)
    msk_f = mask.reshape(N, 1)

    itemsize = jnp.dtype(inp.dtype).itemsize
    vmem_capacity = _vmem_capacity_bytes()
    tm, tv = _pick_tiles(N, V, itemsize, vmem_capacity)
    if tile_rows is not None:
        tm = int(tile_rows)
    if tile_vocab is not None:
        tv = int(tile_vocab)

    n_rt = pl.cdiv(N, tm)       # ragged row tail handled in-kernel (no padding)
    n_vt = pl.cdiv(V, tv)       # ragged vocab tail handled in-kernel

    kernel = functools.partial(_lm_criterion_kernel, n_rows=N, vocab=V,
                               tile_rows=tm, tile_vocab=tv)

    cost = pl.CostEstimate(
        flops=3 * N * V,                          # compare + select + reduce
        transcendentals=0,
        bytes_accessed=N * V * itemsize + N * (4 + itemsize) + n_rt * 8 * 128 * 4,
    )

    vmem_limit = min((vmem_capacity * 3) // 4, 100 * 1024 * 1024)

    parts = pl.pallas_call(
        kernel,
        out_shape=jax.ShapeDtypeStruct((n_rt * 8, 128), jnp.float32),
        grid_spec=pltpu.PrefetchScalarGridSpec(
            num_scalar_prefetch=0,
            grid=(n_rt, n_vt),
            in_specs=[
                pl.BlockSpec((tm, tv), lambda i, kv: (i, kv)),
                pl.BlockSpec((tm, 1), lambda i, kv: (i, 0)),   # resident across kv
                pl.BlockSpec((tm, 1), lambda i, kv: (i, 0)),   # resident across kv
            ],
            out_specs=pl.BlockSpec((8, 128), lambda i, kv: (i, 0)),
        ),
        compiler_params=pltpu.CompilerParams(
            dimension_semantics=("parallel", "arbitrary"),
            vmem_limit_bytes=int(vmem_limit),
        ),
        cost_estimate=cost,
    )(inp_f, tgt_f, msk_f)

    parts = parts.reshape(n_rt, 8, 128)
    num = jnp.sum(parts[:, 0, 0])
    den = jnp.sum(parts[:, 0, 1])
    return (num / den).astype(inp.dtype)


def _reference(inp, target, mask):
    """Pure-JAX reference mirroring the PyTorch forward."""
    B, T, V = inp.shape
    target = target[:, :T]
    mask = mask[:, :T].astype(inp.dtype)
    gathered = jnp.take_along_axis(inp, target[..., None], axis=2)[..., 0]
    out = -gathered * mask
    return jnp.sum(out) / jnp.sum(mask)


def _make_inputs(key, B, T, V):
    k1, k2, k3 = jax.random.split(key, 3)
    logits = jax.random.normal(k1, (B, T, V), dtype=jnp.float32)
    inp = jax.nn.log_softmax(logits, axis=-1)
    target = jax.random.randint(k2, (B, T), 0, V, dtype=jnp.int32)
    mask = (jax.random.uniform(k3, (B, T)) > 0.25).astype(jnp.float32)
    mask = mask.at[0, 0].set(1.0)   # ensure mask sum > 0
    return inp, target, mask


if __name__ == "__main__":
    # TODO(synk): GHM loss branch (use_ghmloss=True / GHMC) not implemented; default path only.
    key = jax.random.PRNGKey(0)
    ka, kb = jax.random.split(key)

    # Case 1: default (auto-picked) tiles, small shapes.
    inp, target, mask = _make_inputs(ka, 2, 8, 128)
    loss = jax.block_until_ready(language_model_criterion(inp, target, mask))
    ref = _reference(inp, target, mask)
    assert jnp.allclose(loss, ref, atol=1e-5, rtol=1e-5), (loss, ref)

    # Case 2: force small tiles to exercise ragged row tail + multi-chunk vocab axis.
    inp2, target2, mask2 = _make_inputs(kb, 2, 11, 320)   # N=22 (ragged), V=320 (ragged vs TV=128)
    loss2 = jax.block_until_ready(
        language_model_criterion(inp2, target2, mask2, tile_rows=8, tile_vocab=128))
    ref2 = _reference(inp2, target2, mask2)
    assert jnp.allclose(loss2, ref2, atol=1e-5, rtol=1e-5), (loss2, ref2)

    print("KERNEL_OK")
</pallas_src>

<mosaic_0001>
module attributes {stable_mosaic.version = 11 : i64} {
  func.func @_lm_criterion_kernel(%arg0: i32, %arg1: i32, %arg2: memref<16x128xf32, #tpu.memory_space<vmem>>, %arg3: memref<16x1xi32, #tpu.memory_space<vmem>>, %arg4: memref<16x1xf32, #tpu.memory_space<vmem>>, %arg5: memref<8x128xf32, #tpu.memory_space<vmem>>) attributes {dimension_semantics = [#tpu.dimension_semantics<parallel>, #tpu.dimension_semantics<arbitrary>], iteration_bounds = array<i64: 1, 1>, scalar_prefetch = 0 : i64, scratch_operands = 0 : i64, tpu.core_type = #tpu.core_type<tc>, window_params = [{transform_indices = @transform_0, window_bounds = array<i64: 16, 128>}, {transform_indices = @transform_1, window_bounds = array<i64: 16, 1>}, {transform_indices = @transform_2, window_bounds = array<i64: 16, 1>}, {transform_indices = @transform_3, window_bounds = array<i64: 8, 128>}]} {
    %c0_i32 = arith.constant 0 : i32
    %0 = arith.cmpi eq, %arg1, %c0_i32 : i32
    %1 = arith.extui %0 : i1 to i32
    %c0_i32_0 = arith.constant 0 : i32
    %2 = arith.cmpi ne, %1, %c0_i32_0 : i32
    scf.if %2 {
      %cst_22 = arith.constant 0.000000e+00 : f32
      %59 = vector.broadcast %cst_22 : f32 to vector<8x128xf32>
      %c0_23 = arith.constant 0 : index
      %c0_24 = arith.constant 0 : index
      %60 = vector.load %arg5[%c0_23, %c0_24] : memref<8x128xf32, #tpu.memory_space<vmem>>, vector<8x128xf32>
      tpu.vector_store %arg5[%c0_23, %c0_24], %59 {strides = array<i32>} : memref<8x128xf32, #tpu.memory_space<vmem>>, vector<8x128xf32>,
    } else {
    }
    %c0 = arith.constant 0 : index
    %c0_1 = arith.constant 0 : index
    %3 = vector.load %arg2[%c0, %c0_1] : memref<16x128xf32, #tpu.memory_space<vmem>>, vector<16x128xf32>
    %c0_2 = arith.constant 0 : index
    %c0_3 = arith.constant 0 : index
    %4 = vector.load %arg3[%c0_2, %c0_3] : memref<16x1xi32, #tpu.memory_space<vmem>>, vector<16x1xi32>
    %c0_4 = arith.constant 0 : index
    %c0_5 = arith.constant 0 : index
    %5 = vector.load %arg4[%c0_4, %c0_5] : memref<16x1xf32, #tpu.memory_space<vmem>>, vector<16x1xf32>
    %c16_i32 = arith.constant 16 : i32
    %6 = arith.muli %arg0, %c16_i32 : i32
    %7 = tpu.iota {dimensions = array<i32: 0>} : vector<16x1xi32>
    %8 = vector.broadcast %6 : i32 to vector<16x1xi32>
    %9 = arith.addi %8, %7 : vector<16x1xi32>
    %c16_i32_6 = arith.constant 16 : i32
    %10 = vector.broadcast %c16_i32_6 : i32 to vector<16x1xi32>
    %11 = arith.cmpi slt, %9, %10 : vector<16x1xi32>
    %c128_i32 = arith.constant 128 : i32
    %12 = arith.muli %arg1, %c128_i32 : i32
    %13 = vector.broadcast %12 : i32 to vector<16x1xi32>
    %14 = arith.subi %4, %13 : vector<16x1xi32>
    %15 = tpu.iota {dimensions = array<i32: 1>} : vector<16x128xi32>
    %16 = vector.broadcast %14 : vector<16x1xi32> to vector<16x128xi32>
    %17 = arith.cmpi eq, %15, %16 : vector<16x128xi32>
    %18 = vector.broadcast %11 : vector<16x1xi1> to vector<16x128xi1>
    %19 = arith.andi %17, %18 : vector<16x128xi1>
    %cst = arith.constant 0.000000e+00 : f32
    %20 = vector.broadcast %cst : f32 to vector<16x128xf32>
    %21 = arith.select %19, %3, %20 : vector<16x128xi1>, vector<16x128xf32>
    %cst_7 = arith.constant dense<0.000000e+00> : vector<16xf32>
    %22 = vector.multi_reduction <add>, %21, %cst_7 [1] : vector<16x128xf32> to vector<16xf32>
    %23 = vector.shape_cast %22 : vector<16xf32> to vector<16x1xf32>
    %cst_8 = arith.constant 0.000000e+00 : f32
    %24 = vector.broadcast %cst_8 : f32 to vector<16x1xf32>
    %25 = arith.select %11, %5, %24 : vector<16x1xi1>, vector<16x1xf32>
    %cst_9 = arith.constant 0.000000e+00 : f32
    %26 = vector.broadcast %cst_9 : f32 to vector<16x1xf32>
    %27 = arith.subf %26, %23 : vector<16x1xf32>
    %28 = arith.mulf %27, %25 : vector<16x1xf32>
    %29 = vector.shape_cast %28 : vector<16x1xf32> to vector<1x16x1xf32>
    %cst_10 = arith.constant dense<0.000000e+00> : vector<1xf32>
    %30 = vector.multi_reduction <add>, %29, %cst_10 [1, 2] : vector<1x16x1xf32> to vector<1xf32>
    %31 = vector.shape_cast %30 : vector<1xf32> to vector<1x1x1xf32>
    %32 = vector.extract %31[0, 0, 0] : f32 from vector<1x1x1xf32>
    %c0_i32_11 = arith.constant 0 : i32
    %33 = arith.cmpi eq, %arg1, %c0_i32_11 : i32
    %34 = vector.shape_cast %25 : vector<16x1xf32> to vector<1x16x1xf32>
    %cst_12 = arith.constant dense<0.000000e+00> : vector<1xf32>
    %35 = vector.multi_reduction <add>, %34, %cst_12 [1, 2] : vector<1x16x1xf32> to vector<1xf32>
    %36 = vector.shape_cast %35 : vector<1xf32> to vector<1x1x1xf32>
    %37 = vector.extract %36[0, 0, 0] : f32 from vector<1x1x1xf32>
    %cst_13 = arith.constant 0.000000e+00 : f32
    %38 = arith.select %33, %37, %cst_13 : f32
    %39 = tpu.iota {dimensions = array<i32: 0>} : vector<8x128xi32>
    %40 = tpu.iota {dimensions = array<i32: 1>} : vector<8x128xi32>
    %c0_14 = arith.constant 0 : index
    %c0_15 = arith.constant 0 : index
    %41 = vector.load %arg5[%c0_14, %c0_15] : memref<8x128xf32, #tpu.memory_space<vmem>>, vector<8x128xf32>
    %c0_i32_16 = arith.constant 0 : i32
    %42 = vector.broadcast %c0_i32_16 : i32 to vector<8x128xi32>
    %43 = arith.cmpi eq, %39, %42 : vector<8x128xi32>
    %c0_i32_17 = arith.constant 0 : i32
    %44 = vector.broadcast %c0_i32_17 : i32 to vector<8x128xi32>
    %45 = arith.cmpi eq, %40, %44 : vector<8x128xi32>
    %46 = arith.andi %43, %45 : vector<8x128xi1>
    %c0_i32_18 = arith.constant 0 : i32
    %47 = vector.broadcast %c0_i32_18 : i32 to vector<8x128xi32>
    %48 = arith.cmpi eq, %39, %47 : vector<8x128xi32>
    %c1_i32 = arith.constant 1 : i32
    %49 = vector.broadcast %c1_i32 : i32 to vector<8x128xi32>
    %50 = arith.cmpi eq, %40, %49 : vector<8x128xi32>
    %51 = arith.andi %48, %50 : vector<8x128xi1>
    %cst_19 = arith.constant 0.000000e+00 : f32
    %52 = vector.broadcast %38 : f32 to vector<8x128xf32>
    %53 = vector.broadcast %cst_19 : f32 to vector<8x128xf32>
    %54 = arith.select %51, %52, %53 : vector<8x128xi1>, vector<8x128xf32>
    %55 = vector.broadcast %32 : f32 to vector<8x128xf32>
    %56 = arith.select %46, %55, %54 : vector<8x128xi1>, vector<8x128xf32>
    %57 = arith.addf %41, %56 : vector<8x128xf32>
    %c0_20 = arith.constant 0 : index
    %c0_21 = arith.constant 0 : index
    %58 = vector.load %arg5[%c0_20, %c0_21] : memref<8x128xf32, #tpu.memory_space<vmem>>, vector<8x128xf32>
    tpu.vector_store %arg5[%c0_20, %c0_21], %57 {strides = array<i32>} : memref<8x128xf32, #tpu.memory_space<vmem>>, vector<8x128xf32>,
    return
  }
  func.func @transform_0(%arg0: i32, %arg1: i32) -> (i32, i32) {
    %c0_i32 = arith.constant 0 : i32
    return %arg0, %arg1 : i32, i32
  }
  func.func @transform_1(%arg0: i32, %arg1: i32) -> (i32, i32) {
    %c0_i32 = arith.constant 0 : i32
    %c0_i32_0 = arith.constant 0 : i32
    return %arg0, %c0_i32 : i32, i32
  }
  func.func @transform_2(%arg0: i32, %arg1: i32) -> (i32, i32) {
    %c0_i32 = arith.constant 0 : i32
    %c0_i32_0 = arith.constant 0 : i32
    return %arg0, %c0_i32 : i32, i32
  }
  func.func @transform_3(%arg0: i32, %arg1: i32) -> (i32, i32) {
    %c0_i32 = arith.constant 0 : i32
    %c0_i32_0 = arith.constant 0 : i32
    return %arg0, %c0_i32 : i32, i32
  }
}

</mosaic_0001>

<llo_original>
// kernel: language_model_criterion.1
$region0: #{language_model_criterion.1}
  #allocation0 [shape = 'u32[]', space=smem, size = 0x4, offset = 0x4, fixed_abs, tag = 'smem constant byte address 0x4 - core index']
  #allocation1 [shape = 'u32[144,128]{1,0:T(1,128)}', space=vmem, size = 0x12000, scoped, tag = 'internal scratch']
  %s0 = inlined_call_operand.vmem [shape: f32[16,128], index: 0, kind: input, shape index: {}]
  %s1 = inlined_call_operand.vmem [shape: s32[16,1], index: 1, kind: input, shape index: {}]
  %s2 = inlined_call_operand.vmem [shape: f32[16,1], index: 2, kind: input, shape index: {}]
  %s3 = inlined_call_operand.vmem [shape: f32[8,128], index: 3, kind: output, shape index: {}]
  %s4 = sld [smem:[#allocation0]]
  $region26: #{language_model_criterion.1} parent=0
    _
  %s6 = ssub.s32 1, %s4
  %s7 = scalar_select 0, %s6, %s4
  // Predicated region
  $region2: #{language_model_criterion.1} parent=0 // pred_check
    _
  $region3: #{language_model_criterion.1} parent=0 // pred_check_branch
    %9 = sbr.rel (0) target = $region5
  $region4: #{language_model_criterion.1} parent=0 // pred_region
    _
  $region5: #{language_model_criterion.1} parent=0 // pred_fallthru
    _
  // Predicated region
  $region6: #{language_model_criterion.1} parent=0 // pred_check
    _
  $region7: #{language_model_criterion.1} parent=0 // pred_check_branch
    %11 = sbr.rel (0) target = $region9
  $region8: #{language_model_criterion.1} parent=0 // pred_region
    _
  $region9: #{language_model_criterion.1} parent=0 // pred_fallthru
    _
  // Predicated region
  $region10: #{language_model_criterion.1} parent=0 // pred_check
    _
  $region11: #{language_model_criterion.1} parent=0 // pred_check_branch
    %13 = sbr.rel (0) target = $region13
  $region12: #{language_model_criterion.1} parent=0 // pred_region
    _
  $region13: #{language_model_criterion.1} parent=0 // pred_fallthru
    _
  %p14 = scmp.eq.s32.totalorder 0, 0
  // Predicated region
  $region14: #{language_model_criterion.1} parent=0 // pred_check
    %p15 = pneg %p14
  $region15: #{language_model_criterion.1} parent=0 // pred_check_branch
    %17 = sbr.rel (%p15) target = $region17
  $region16: #{language_model_criterion.1} parent=0 // pred_region
    %18 = vst [vmem:[%s3] sm:$0xff] 0.0
  $region17: #{language_model_criterion.1} parent=0 // pred_fallthru
    _
  %v19 = vld [vmem:[%s0] sm:$0xff]
  %v20 = vld [vmem:[%s0 + $0x8] sm:$0xff]
  %v21 = vld [vmem:[%s1] sm:$0xff]
  %v22 = vld [vmem:[%s1 + $0x8] sm:$0xff]
  %v23 = vld [vmem:[%s2] sm:$0xff]
  %v24 = vld [vmem:[%s2 + $0x8] sm:$0xff]
  %s25 = smul.u32 0, 16
  %v26 = vlaneseq
  %v27 = vshrl.u32 %v26, 7
  %v28 = vadd.s32 %v27, 8
  %v29 = vstv %s25
  %v30 = vadd.s32 %v29, %v27
  %v31 = vadd.s32 %v29, %v28
  %vm32 = vcmp.lt.s32.totalorder %v30, 16
  %vm33 = vcmp.lt.s32.totalorder %v31, 16
  %s34 = smul.u32 0, 128
  %v35 = vstv %s34
  %v36 = vsub.s32 %v21, %v35
  %v37 = vsub.s32 %v22, %v35
  %v38 = vlaneseq
  %v39 = vand.u32 %v38, 127
  %40 = vset.pattern.permute.xlu0 0
  %41 = vperm.xlu0 %40, %v36
  %v42 = vpop.permute.xlu0 %41
  %43 = vset.pattern.permute.xlu0 0
  %44 = vperm.xlu0 %43, %v37
  %v45 = vpop.permute.xlu0 %44
  %vm46 = vcmp.eq.s32.totalorder %v39, %v42
  %vm47 = vcmp.eq.s32.totalorder %v39, %v45
  %v48 = vsel %vm32, 1, 0
  %v49 = vsel %vm33, 1, 0
  %vm50 = vcmp.eq.s32.totalorder %v48, 1
  %vm51 = vcmp.eq.s32.totalorder %v49, 1
  %vm52 = vmand %vm46, %vm50
  %vm53 = vmand %vm47, %vm51
  %v54 = vsel %vm52, %v19, 0.0
  %v55 = vsel %vm53, %v20, 0.0
  %56 = vadd.xlane.f32.xlu0 %v54
  %v57 = vpop.xlane.xlu0 %56
  %58 = vadd.xlane.f32.xlu0 %v55
  %v59 = vpop.xlane.xlu0 %58
  %v60 = vsel %vm32, %v23, 0.0
  %v61 = vsel %vm33, %v24, 0.0
  %v62 = vsub.f32 0.0, %v57
  %v63 = vsub.f32 0.0, %v59
  %v64 = vmul.f32 %v62, %v60
  %v65 = vmul.f32 %v63, %v61
  %vm66 = vcmask 7168
  %v67 = vsel %vm66, %v64, 0.0
  %v68 = vsel %vm66, %v65, 0.0
  %v69 = vadd.f32 %v67, %v68
  %70 = vadd.xlane.f32.xlu0 %v69
  %v71 = vpop.xlane.xlu0 %70
  %v72 = vrot.slane %v71, 4
  %v73 = vadd.f32 %v71, %v72
  %v74 = vrot.slane %v73, 2
  %v75 = vadd.f32 %v73, %v74
  %v76 = vrot.slane %v75, 1
  %v77 = vadd.f32 %v75, %v76
  %s78 = vtos %v77
  %v79 = vsel %vm66, %v60, 0.0
  %v80 = vsel %vm66, %v61, 0.0
  %v81 = vadd.f32 %v79, %v80
  %82 = vadd.xlane.f32.xlu0 %v81
  %v83 = vpop.xlane.xlu0 %82
  %v84 = vrot.slane %v83, 4
  %v85 = vadd.f32 %v83, %v84
  %v86 = vrot.slane %v85, 2
  %v87 = vadd.f32 %v85, %v86
  %v88 = vrot.slane %v87, 1
  %v89 = vadd.f32 %v87, %v88
  %s90 = vtos %v89
  %s91 = scalar_select %p14, %s90, 0.0
  %v92 = vld [vmem:[%s3] sm:$0xff]
  %vm93 = vcmp.eq.s32.totalorder %v27, 0
  %vm94 = vcmp.eq.s32.totalorder %v39, 0
  %vm95 = vmand %vm93, %vm94
  %vm96 = vcmp.eq.s32.totalorder %v39, 1
  %vm97 = vmand %vm93, %vm96
  %v98 = vstv %s91
  %v99 = vsel %vm97, %v98, 0.0
  %v100 = vstv %s78
  %v101 = vsel %vm95, %v100, %v99
  %v102 = vadd.f32 %v92, %v101
  %103 = vst [vmem:[%s3] sm:$0xff] %v102
  // Predicated region
  $region18: #{language_model_criterion.1} parent=0 // pred_check
    _
  $region19: #{language_model_criterion.1} parent=0 // pred_check_branch
    %105 = sbr.rel (0) target = $region21
  $region20: #{language_model_criterion.1} parent=0 // pred_region
    _
  $region21: #{language_model_criterion.1} parent=0 // pred_fallthru
    _
  // Predicated region
  $region22: #{language_model_criterion.1} parent=0 // pred_check
    _
  $region23: #{language_model_criterion.1} parent=0 // pred_check_branch
    %107 = sbr.rel (0) target = $region25
  $region24: #{language_model_criterion.1} parent=0 // pred_region
    _
  $region25: #{language_model_criterion.1} parent=0 // pred_fallthru
    _

</llo_original>
